<compile_context>
chip_gen: v5e
topology: v5e:2x2
jax: 0.10.0
libtpu: 0.0.40
codegen_flags: <defaults>
</compile_context>

<pallas_src>
import jax
import jax.numpy as jnp
from jax.experimental import pallas as pl
from jax.experimental.pallas import tpu as pltpu


def _fused_head_kernel(w_ref, b_ref, x_ref, o_ref):
    # w_ref: (C_out, C_in)   resident across the grid (constant index_map)
    # b_ref: (C_out, 1)      resident; broadcast along the lane dim
    # x_ref: (C_in, tm)      one spatial tile of one batch element (NCHW slab)
    # o_ref: (C_out, tm)     lane-dense output tile
    acc = jnp.dot(w_ref[...], x_ref[...], preferred_element_type=jnp.float32)
    o_ref[...] = (acc + b_ref[...]).astype(o_ref.dtype)


def _fused_head_level(x_nchw, w_cat, b_cat, tm=4096):
    """One FPN level: x_nchw (N, C_in, H, W), w_cat (C_out, C_in), b_cat (C_out,).

    Returns (N, C_out, H*W) = the 1x1-conv output, still in channel-major layout.
    """
    N, C_in, H, W = x_nchw.shape
    C_out = w_cat.shape[0]
    M = H * W

    x = x_nchw.reshape(N, C_in, M)          # free view, no data movement
    b2d = b_cat.reshape(C_out, 1).astype(jnp.float32)

    # Spatial tile: full extent if it fits, otherwise a multiple of 128 lanes.
    # Ragged last tiles (M % tm_eff != 0) are handled by Pallas block padding:
    # each output column depends only on its own input column, and out-of-bounds
    # stores of the last tile are dropped.
    tm_eff = M if tm >= M else (tm // 128) * 128
    grid = (N, pl.cdiv(M, tm_eff))

    out = pl.pallas_call(
        _fused_head_kernel,
        out_shape=jax.ShapeDtypeStruct((N, C_out, M), x_nchw.dtype),
        grid_spec=pltpu.PrefetchScalarGridSpec(
            num_scalar_prefetch=0,
            grid=grid,
            in_specs=[
                pl.BlockSpec((C_out, C_in), lambda n, j: (0, 0)),       # weights (resident)
                pl.BlockSpec((C_out, 1), lambda n, j: (0, 0)),          # bias    (resident)
                pl.BlockSpec((None, C_in, tm_eff), lambda n, j: (n, 0, j)),
            ],
            out_specs=pl.BlockSpec((None, C_out, tm_eff), lambda n, j: (n, 0, j)),
        ),
        compiler_params=pltpu.CompilerParams(
            dimension_semantics=("parallel", "parallel")),
    )(w_cat, b2d, x)
    return out


def retinaface_heads(features, bbox_params, cls_params, num_anchors=2, tm=4096):
    """Fused BboxHead + ClassHead over all FPN levels (RetinaFace eval-mode tail).

    features:    list of (N, C_in, H_i, W_i) feature maps (SSH outputs)
    bbox_params: list of (weight (A*4, C_in), bias (A*4,)) per level
    cls_params:  list of (weight (A*2, C_in), bias (A*2,)) per level
    Returns (bbox_regressions (N, sum_i H_i*W_i*A, 4),
             classifications  (N, sum_i H_i*W_i*A, 2))  with softmax applied.
    """
    A4 = num_anchors * 4
    bbox_outs, cls_outs = [], []
    for x, (wb, bb), (wc, bc) in zip(features, bbox_params, cls_params):
        N, C_in, H, W = x.shape
        M = H * W
        # Fuse the two heads of this level into one weight/bias tile -> x read once.
        w_cat = jnp.concatenate([wb, wc], axis=0)            # (A*6, C_in)
        b_cat = jnp.concatenate([bb, bc], axis=0)            # (A*6,)
        out = _fused_head_level(x, w_cat, b_cat, tm=tm)      # (N, A*6, M)
        # Tiny output permute (only A*6 = 12 channels) in plain JAX.
        out_nhwc = jnp.transpose(out, (0, 2, 1))             # (N, M, A*6)
        bbox_outs.append(out_nhwc[:, :, :A4].reshape(N, M * num_anchors, 4))
        cls_outs.append(out_nhwc[:, :, A4:].reshape(N, M * num_anchors, 2))

    bbox = jnp.concatenate(bbox_outs, axis=1)
    cls = jnp.concatenate(cls_outs, axis=1)
    cls = jax.nn.softmax(cls, axis=-1)                       # RetinaFace eval mode
    return bbox, cls


def _ref_heads(features, bbox_params, cls_params, num_anchors):
    """Pure-JAX reference with the original PyTorch dataflow (NHWC permute first)."""
    bbox_outs, cls_outs = [], []
    for x, (wb, bb), (wc, bc) in zip(features, bbox_params, cls_params):
        N, C_in, H, W = x.shape
        x_nhwc = jnp.transpose(x, (0, 2, 3, 1)).reshape(-1, C_in)
        bbox_outs.append((x_nhwc @ wb.T + bb).reshape(N, H * W * num_anchors, 4))
        cls_outs.append((x_nhwc @ wc.T + bc).reshape(N, H * W * num_anchors, 2))
    bbox = jnp.concatenate(bbox_outs, axis=1)
    cls = jax.nn.softmax(jnp.concatenate(cls_outs, axis=1), axis=-1)
    return bbox, cls


if __name__ == "__main__":
    key = jax.random.PRNGKey(0)

    # RetinaFace config: SSH output channels = 64, anchor_num = 2, 3 FPN levels.
    N, C_in, A = 2, 64, 2
    level_hw = [(16, 16), (8, 8), (4, 4)]   # strides 8/16/32 of a 128x128 input

    k_iter = iter(jax.random.split(key, 16))
    features, bbox_params, cls_params = [], [], []
    for (H, W) in level_hw:
        features.append(jax.random.normal(next(k_iter), (N, C_in, H, W), jnp.float32))
        wb = jax.random.normal(next(k_iter), (A * 4, C_in), jnp.float32) * 0.05
        bb = jax.random.normal(next(k_iter), (A * 4,), jnp.float32) * 0.05
        wc = jax.random.normal(next(k_iter), (A * 2, C_in), jnp.float32) * 0.05
        bc = jax.random.normal(next(k_iter), (A * 2,), jnp.float32) * 0.05
        bbox_params.append((wb, bb))
        cls_params.append((wc, bc))

    bbox, cls = retinaface_heads(features, bbox_params, cls_params, num_anchors=A)
    bbox = jax.block_until_ready(bbox)
    cls = jax.block_until_ready(cls)

    ref_bbox, ref_cls = _ref_heads(features, bbox_params, cls_params, A)
    total_anchors = sum(H * W * A for (H, W) in level_hw)
    assert bbox.shape == (N, total_anchors, 4)
    assert cls.shape == (N, total_anchors, 2)
    assert jnp.allclose(bbox, ref_bbox, atol=1e-4, rtol=1e-4)
    assert jnp.allclose(cls, ref_cls, atol=1e-4, rtol=1e-4)

    print("KERNEL_OK")
</pallas_src>

<mosaic_0001>
module attributes {stable_mosaic.version = 11 : i64} {
  func.func @_fused_head_kernel(%arg0: i32, %arg1: i32, %arg2: memref<12x64xf32, #tpu.memory_space<vmem>>, %arg3: memref<12x1xf32, #tpu.memory_space<vmem>>, %arg4: memref<1x64x256xf32, #tpu.memory_space<vmem>>, %arg5: memref<1x12x256xf32, #tpu.memory_space<vmem>>) attributes {dimension_semantics = [#tpu.dimension_semantics<parallel>, #tpu.dimension_semantics<parallel>], iteration_bounds = array<i64: 2, 1>, scalar_prefetch = 0 : i64, scratch_operands = 0 : i64, tpu.core_type = #tpu.core_type<tc>, window_params = [{pipeline_mode = #tpu.pipeline_mode<synchronous>, transform_indices = @transform_0, window_bounds = array<i64: 12, 64>}, {pipeline_mode = #tpu.pipeline_mode<synchronous>, transform_indices = @transform_1, window_bounds = array<i64: 12, 1>}, {transform_indices = @transform_2, window_bounds = array<i64: 1, 64, 256>}, {transform_indices = @transform_3, window_bounds = array<i64: 1, 12, 256>}]} {
    %c0 = arith.constant 0 : index
    %c0_0 = arith.constant 0 : index
    %0 = vector.load %arg2[%c0, %c0_0] : memref<12x64xf32, #tpu.memory_space<vmem>>, vector<12x64xf32>
    %c0_1 = arith.constant 0 : index
    %c0_2 = arith.constant 0 : index
    %c0_3 = arith.constant 0 : index
    %1 = vector.load %arg4[%c0_1, %c0_2, %c0_3] : memref<1x64x256xf32, #tpu.memory_space<vmem>>, vector<1x64x256xf32>
    %2 = vector.shape_cast %1 : vector<1x64x256xf32> to vector<64x256xf32>
    %cst = arith.constant dense<0.000000e+00> : vector<12x256xf32>
    %3 = tpu.matmul %0, %2, %cst {dimension_numbers = #tpu.dot_dimension_numbers<[1], [0], [0], [1], [0, 0, 1, 1], [], []>} : vector<12x64xf32>, vector<64x256xf32>, vector<12x256xf32> -> vector<12x256xf32>
    %c0_4 = arith.constant 0 : index
    %c0_5 = arith.constant 0 : index
    %4 = vector.load %arg3[%c0_4, %c0_5] : memref<12x1xf32, #tpu.memory_space<vmem>>, vector<12x1xf32>
    %5 = vector.broadcast %4 : vector<12x1xf32> to vector<12x256xf32>
    %6 = arith.addf %3, %5 : vector<12x256xf32>
    %c0_6 = arith.constant 0 : index
    %c0_7 = arith.constant 0 : index
    %c0_8 = arith.constant 0 : index
    %7 = vector.load %arg5[%c0_6, %c0_7, %c0_8] : memref<1x12x256xf32, #tpu.memory_space<vmem>>, vector<1x12x256xf32>
    %8 = vector.shape_cast %7 : vector<1x12x256xf32> to vector<12x256xf32>
    %9 = vector.shape_cast %6 : vector<12x256xf32> to vector<1x12x256xf32>
    tpu.vector_store %arg5[%c0_6, %c0_7, %c0_8], %9 {strides = array<i32>} : memref<1x12x256xf32, #tpu.memory_space<vmem>>, vector<1x12x256xf32>,
    return
  }
  func.func @transform_0(%arg0: i32, %arg1: i32) -> (i32, i32) {
    %c0_i32 = arith.constant 0 : i32
    %c0_i32_0 = arith.constant 0 : i32
    %c0_i32_1 = arith.constant 0 : i32
    return %c0_i32, %c0_i32_0 : i32, i32
  }
  func.func @transform_1(%arg0: i32, %arg1: i32) -> (i32, i32) {
    %c0_i32 = arith.constant 0 : i32
    %c0_i32_0 = arith.constant 0 : i32
    %c0_i32_1 = arith.constant 0 : i32
    return %c0_i32, %c0_i32_0 : i32, i32
  }
  func.func @transform_2(%arg0: i32, %arg1: i32) -> (i32, i32, i32) {
    %c0_i32 = arith.constant 0 : i32
    %c0_i32_0 = arith.constant 0 : i32
    return %arg0, %c0_i32, %arg1 : i32, i32, i32
  }
  func.func @transform_3(%arg0: i32, %arg1: i32) -> (i32, i32, i32) {
    %c0_i32 = arith.constant 0 : i32
    %c0_i32_0 = arith.constant 0 : i32
    return %arg0, %c0_i32, %arg1 : i32, i32, i32
  }
}

</mosaic_0001>

<llo_original>
// kernel: tpu_custom_call.1
$region0: #{tpu_custom_call.1}
  #allocation0 [shape = 'u32[]', space=smem, size = 0x4, offset = 0x4, fixed_abs, tag = 'smem constant byte address 0x4 - core index']
  #allocation1 [shape = 'u32[72,128]{1,0:T(1,128)}', space=vmem, size = 0x9000, scoped, tag = 'internal scratch']
  %s0 = inlined_call_operand.vmem [shape: f32[12,64], index: 0, kind: input, shape index: {}]
  %s1 = inlined_call_operand.vmem [shape: f32[12,1], index: 1, kind: input, shape index: {}]
  %s2 = inlined_call_operand.hbm [shape: f32[2,64,256], index: 2, kind: input, shape index: {}]
  %s3 = inlined_call_operand.vmem [shape: f32[2,12,256], index: 3, kind: output, shape index: {}]
  %s4 = sld [smem:[#allocation0]]
  $region49: #{tpu_custom_call.1} parent=0
    _
  %s6 = ssub.s32 1, %s4
  %s7 = scalar_select 0, %s6, %s4
  $region1: #{tpu_custom_call.1} parent=0
    #allocation2 [shape = 'u8[131072]{0}', space=vmem, size = 0x20000, scoped, tag = 'input window, operand 2']
    #allocation3 [shape = 's32[2]{0}', space=sflag, size = 0x8, scoped, tag = 'scoped memory for tpu_custom_call.1']
    %8 = vsyncpa [#allocation3], 0
    %s9 = scalar_lea.sflag [#allocation3], 1
    %10 = vsyncpa %s9, 0
    loop: start=0, step=1, limit=4
    $region2: #{tpu_custom_call.1} parent=1 // loop_pre_header
      _
    $region3: #{tpu_custom_call.1} parent=1 // loop_header
      %s12 = sphi 0, %s16
      %p13 = scmp.ge.s32.totalorder %s12, 4
      %s19 = sphi 0, %s31
      %s20 = sphi 0, %s27
      %s21 = sphi 0, %s19
      %s22 = sphi 0, %s20
      %s23 = sphi 0, %s21
      %s24 = sphi 0, %s22
      %s32 = sphi 0, %s32
      %s34 = sphi 0, %s32
      %s35 = sphi 0, %s34
      %s49 = sphi 0, %s35
      %s53 = sphi 0, %s53
      %s55 = sphi 0, %s53
      %s56 = sphi 0, %s55
      %s70 = sphi 0, %s56
      %s78 = sphi 0, %s80
      %s81 = sphi 0, %s78
      %s82 = sphi 0, %s81
      %s98 = sphi 0, %s82
      %s106 = sphi 0, %s108
      %s109 = sphi 0, %s106
      %s110 = sphi 0, %s109
      %s126 = sphi 0, %s110
    $region4: #{tpu_custom_call.1} parent=1 // loop_header_branch
      %15 = sbr.rel (%p13) target = $region8
    $region5: #{tpu_custom_call.1} parent=1 // loop_body
      %s17 = ssub.s32 %s12, 1
      %s18 = ssub.s32 %s12, 2
      %s25 = sadd.s32 1, %s20
      %p26 = scmp.ge.s32.totalorder %s25, 1
      %s27 = scalar_select %p26, 0, %s25
      %s28 = sadd.s32 1, %s19
      %s29 = scalar_select %p26, %s28, %s19
      %p30 = scmp.ge.s32.totalorder %s29, 2
      %s31 = scalar_select %p30, 0, %s29
      %s33 = sadd.s32 %s32, 1
      %p36 = scmp.eq.s32.totalorder %s12, 1
      %p37 = scmp.ne.s32.totalorder %s32, %s34
      %p38 = scmp.eq.s32.totalorder %s12, 0
      %p39 = por %p37, %p38
      %p40 = scmp.ne.s32.totalorder %s32, %s34
      %p41 = scmp.eq.s32.totalorder %s17, 1
      %p42 = por %p40, %p41
      %p43 = scmp.ne.s32.totalorder %s34, %s35
      %p44 = scmp.eq.s32.totalorder %s17, 0
      %p45 = por %p43, %p44
      %p46 = scmp.ne.s32.totalorder %s34, %s35
      %p47 = scmp.eq.s32.totalorder %s18, 1
      %p48 = por %p46, %p47
      %p50 = scmp.ne.s32.totalorder %s35, %s49
      %p51 = scmp.eq.s32.totalorder %s18, 0
      %p52 = por %p50, %p51
      %s54 = sadd.s32 %s53, 1
      %p57 = scmp.eq.s32.totalorder %s12, 1
      %p58 = scmp.ne.s32.totalorder %s53, %s55
      %p59 = scmp.eq.s32.totalorder %s12, 0
      %p60 = por %p58, %p59
      %p61 = scmp.ne.s32.totalorder %s53, %s55
      %p62 = scmp.eq.s32.totalorder %s17, 1
      %p63 = por %p61, %p62
      %p64 = scmp.ne.s32.totalorder %s55, %s56
      %p65 = scmp.eq.s32.totalorder %s17, 0
      %p66 = por %p64, %p65
      %p67 = scmp.ne.s32.totalorder %s55, %s56
      %p68 = scmp.eq.s32.totalorder %s18, 1
      %p69 = por %p67, %p68
      %p71 = scmp.ne.s32.totalorder %s56, %s70
      %p72 = scmp.eq.s32.totalorder %s18, 0
      %p73 = por %p71, %p72
      %s74 = ssub.s32 %s19, %s31
      %s75 = ssub.s32 %s20, %s27
      %s76 = sor.u32 %s74, %s75
      %p77 = scmp.eq.s32.totalorder %s76, 0
      %s79 = sadd.s32 %s78, 1
      %s80 = scalar_select %p77, %s78, %s79
      %p83 = pneg %p77
      %p84 = scmp.eq.s32.totalorder %s12, 1
      %p85 = por %p83, %p84
      %p86 = scmp.ne.s32.totalorder %s78, %s81
      %p87 = scmp.eq.s32.totalorder %s12, 0
      %p88 = por %p86, %p87
      %p89 = scmp.ne.s32.totalorder %s78, %s81
      %p90 = scmp.eq.s32.totalorder %s17, 1
      %p91 = por %p89, %p90
      %p92 = scmp.ne.s32.totalorder %s81, %s82
      %p93 = scmp.eq.s32.totalorder %s17, 0
      %p94 = por %p92, %p93
      %p95 = scmp.ne.s32.totalorder %s81, %s82
      %p96 = scmp.eq.s32.totalorder %s18, 1
      %p97 = por %p95, %p96
      %p99 = scmp.ne.s32.totalorder %s82, %s98
      %p100 = scmp.eq.s32.totalorder %s18, 0
      %p101 = por %p99, %p100
      %s102 = ssub.s32 %s19, %s31
      %s103 = ssub.s32 %s20, %s27
      %s104 = sor.u32 %s102, %s103
      %p105 = scmp.eq.s32.totalorder %s104, 0
      %s107 = sadd.s32 %s106, 1
      %s108 = scalar_select %p105, %s106, %s107
      %p111 = pneg %p105
      %p112 = scmp.eq.s32.totalorder %s12, 1
      %p113 = por %p111, %p112
      %p114 = scmp.ne.s32.totalorder %s106, %s109
      %p115 = scmp.eq.s32.totalorder %s12, 0
      %p116 = por %p114, %p115
      %p117 = scmp.ne.s32.totalorder %s106, %s109
      %p118 = scmp.eq.s32.totalorder %s17, 1
      %p119 = por %p117, %p118
      %p120 = scmp.ne.s32.totalorder %s109, %s110
      %p121 = scmp.eq.s32.totalorder %s17, 0
      %p122 = por %p120, %p121
      %p123 = scmp.ne.s32.totalorder %s109, %s110
      %p124 = scmp.eq.s32.totalorder %s18, 1
      %p125 = por %p123, %p124
      %p127 = scmp.ne.s32.totalorder %s110, %s126
      %p128 = scmp.eq.s32.totalorder %s18, 0
      %p129 = por %p127, %p128
      %p130 = scmp.le.s32.totalorder 1, %s12
      %p131 = scmp.lt.s32.totalorder %s12, 3
      %p132 = pnand %p130, %p131
      %p133 = pneg %p132
      // Predicated region
      $region9: #{tpu_custom_call.1} parent=5 // pred_check
        _
      $region10: #{tpu_custom_call.1} parent=5 // pred_check_branch
        %135 = sbr.rel (%p132) target = $region12
      $region11: #{tpu_custom_call.1} parent=5 // pred_region
        %s136 = ssub.s32 %s12, 1
        // Predicated region
        $region13: #{tpu_custom_call.1} parent=11 // pred_check
          %p137 = pneg %p45
        $region14: #{tpu_custom_call.1} parent=11 // pred_check_branch
          %139 = sbr.rel (%p137) target = $region16
        $region15: #{tpu_custom_call.1} parent=11 // pred_region
          _
        $region16: #{tpu_custom_call.1} parent=11 // pred_fallthru
          _
        // Predicated region
        $region17: #{tpu_custom_call.1} parent=11 // pred_check
          %p140 = pneg %p66
        $region18: #{tpu_custom_call.1} parent=11 // pred_check_branch
          %142 = sbr.rel (%p140) target = $region20
        $region19: #{tpu_custom_call.1} parent=11 // pred_region
          _
        $region20: #{tpu_custom_call.1} parent=11 // pred_fallthru
          _
      $region12: #{tpu_custom_call.1} parent=5 // pred_fallthru
        _
      %p143 = scmp.lt.s32.totalorder %s12, 2
      // Predicated region
      $region21: #{tpu_custom_call.1} parent=5 // pred_check
        %p144 = pneg %p143
      $region22: #{tpu_custom_call.1} parent=5 // pred_check_branch
        %146 = sbr.rel (%p144) target = $region24
      $region23: #{tpu_custom_call.1} parent=5 // pred_region
        // Predicated region
        $region25: #{tpu_custom_call.1} parent=23 // pred_check
          %p147 = pneg %p88
        $region26: #{tpu_custom_call.1} parent=23 // pred_check_branch
          %149 = sbr.rel (%p147) target = $region28
        $region27: #{tpu_custom_call.1} parent=23 // pred_region
          %s150 = sand.u32 %s78, 1
          %s151 = scalar_lea.sflag [#allocation3], %s150
          %s152 = sand.u32 %s78, 1
          %s153 = smul.addr %s152, 128
          %s154 = scalar_lea.vmem [#allocation2], %s153
          %s155 = smul.u32 2, %s20
          %157 = vsyncadd %s151, 0
          %s158 = smul.addr %s19, 16
          %s159 = sadd.s32 %s155, %s158
          %s160 = smul.addr %s159, 8
          %s161 = scalar_lea.hbm %s2, %s160
          %s162 = sshll.u32 %s161, 4
          %s163 = int_to_ptr.hbm [resolvable:$true] %s162
          %s164 = sshll.u32 %s154, 4
          %s165 = int_to_ptr.vmem [resolvable:$true] %s164
          %170 = dma.hbm_to_vmem [thread:$0]  %s163, 2048, %s165, %s151, 256, 256, 16
        $region28: #{tpu_custom_call.1} parent=23 // pred_fallthru
          _
      $region24: #{tpu_custom_call.1} parent=5 // pred_fallthru
        _
      %p171 = scmp.le.s32.totalorder 1, %s12
      %p172 = scmp.lt.s32.totalorder %s12, 3
      %p173 = pnand %p171, %p172
      %p174 = pneg %p173
      // Predicated region
      $region29: #{tpu_custom_call.1} parent=5 // pred_check
        _
      $region30: #{tpu_custom_call.1} parent=5 // pred_check_branch
        %176 = sbr.rel (%p173) target = $region32
      $region31: #{tpu_custom_call.1} parent=5 // pred_region
        %s177 = ssub.s32 %s12, 1
        %s178 = sand.u32 %s81, 1
        %s179 = scalar_lea.sflag [#allocation3], %s178
        %s180 = sand.u32 %s81, 1
        %s181 = smul.addr %s180, 128
        %s182 = scalar_lea.vmem [#allocation2], %s181
        // Predicated region
        $region33: #{tpu_custom_call.1} parent=31 // pred_check
          %p183 = pneg %p94
        $region34: #{tpu_custom_call.1} parent=31 // pred_check_branch
          %185 = sbr.rel (%p183) target = $region36
        $region35: #{tpu_custom_call.1} parent=31 // pred_region
          %187 = dma.done %s179, 2048
        $region36: #{tpu_custom_call.1} parent=31 // pred_fallthru
          _
        %p188 = pneg %p45
        %p189 = pneg %p42
        %p190 = pneg %p66
        %p191 = pneg %p63
        %s192 = sand.u32 %s81, 1
        %s193 = scalar_lea.sflag [#allocation3], %s192
        %s194 = sand.u32 %s81, 1
        %s195 = smul.addr %s194, 128
        %s196 = scalar_lea.vmem [#allocation2], %s195
        %p197 = pneg %p94
        %p198 = pneg %p91
        %p199 = pneg %p122
        %p200 = pneg %p119
        %s201 = smul.u32 2, %s22
        %p202 = scmp.lt.s32.totalorder %s21, 1
        %s203 = scalar_select %p202, %s21, 1
        %p204 = scmp.lt.s32.totalorder %s201, 1
        %s205 = scalar_select %p204, %s201, 1
        %s206 = smul.addr %s203, 4
        %s207 = sadd.s32 %s205, %s206
        %s208 = smul.addr %s207, 8
        %s209 = scalar_lea.vmem %s3, %s208
        %s210 = smul.u32 2, %s22
        %s211 = smul.u32 2, %s22
        %p212 = scmp.lt.s32.totalorder %s21, 1
        %s213 = scalar_select %p212, %s21, 1
        %p214 = scmp.lt.s32.totalorder %s211, 1
        %s215 = scalar_select %p214, %s211, 1
        %s216 = smul.addr %s213, 4
        %s217 = sadd.s32 %s215, %s216
        %s218 = smul.addr %s217, 8
        %s219 = scalar_lea.vmem %s3, %s218
        %s220 = smul.u32 2, %s22
        %v221 = vld [vmem:[%s0] sm:$0xff]
        %v222 = vld [vmem:[%s0 + $0x8] sm:$0xf]
        %v223 = vld [vmem:[%s182] sm:$0xff]
        %v224 = vld [vmem:[%s182 + $0x8] sm:$0xff]
        %v225 = vld [vmem:[%s182 + $0x10] sm:$0xff]
        %v226 = vld [vmem:[%s182 + $0x18] sm:$0xff]
        %v227 = vld [vmem:[%s182 + $0x20] sm:$0xff]
        %v228 = vld [vmem:[%s182 + $0x28] sm:$0xff]
        %v229 = vld [vmem:[%s182 + $0x30] sm:$0xff]
        %v230 = vld [vmem:[%s182 + $0x38] sm:$0xff]
        %v231 = vld [vmem:[%s182 + $0x40] sm:$0xff]
        %v232 = vld [vmem:[%s182 + $0x48] sm:$0xff]
        %v233 = vld [vmem:[%s182 + $0x50] sm:$0xff]
        %v234 = vld [vmem:[%s182 + $0x58] sm:$0xff]
        %v235 = vld [vmem:[%s182 + $0x60] sm:$0xff]
        %v236 = vld [vmem:[%s182 + $0x68] sm:$0xff]
        %v237 = vld [vmem:[%s182 + $0x70] sm:$0xff]
        %v238 = vld [vmem:[%s182 + $0x78] sm:$0xff]
        %v239 = vld [vmem:[%s1] sm:$0xff]
        %v240 = vld [vmem:[%s1 + $0x8] sm:$0xf]
        %242 = vset.pattern.permute.xlu0 0
        %243 = vperm.xlu0 %242, %v239
        %v244 = vpop.permute.xlu0 %243
        %247 = vset.pattern.permute.xlu0 0
        %248 = vperm.xlu0 %247, %v240
        %v249 = vpop.permute.xlu0 %248
        %vm251 = vcmask 523264
        %v253 = vsel %vm251, %v221, 0
        %v256 = vsel %vm251, %v222, 0
        %258 = vmatpush.msra.mxu0 0.0
        %259 = vmatpush.msra.mxu0 0.0
        %260 = vmatpush.msra.mxu0 0.0
        %261 = vmatpush.msra.mxu0 0.0
        %262 = vmatpush.msra.mxu0 0.0
        %263 = vmatpush.msra.mxu0 0.0
        %264 = vmatpush.msra.mxu0 0.0
        %265 = vmatpush.msra.mxu0 0.0
        %266 = vmatpush.msra.mxu0 %v237
        %267 = vmatpush.msra.mxu0 %v235
        %268 = vmatpush.msra.mxu0 %v233
        %269 = vmatpush.msra.mxu0 %v231
        %270 = vmatpush.msra.mxu0 %v229
        %271 = vmatpush.msra.mxu0 %v227
        %272 = vmatpush.msra.mxu0 %v225
        %273 = vmatpush.msra.mxu0 %v223
        %274 = vmatmul.f32.gmra.mxu0 %v253
        %v275 = vpop.f32.mrf.mxu0
        %v276 = vadd.f32 %v244, %v275
        %277 = vmatmul.f32.gmra.mxu0 %v256
        %v278 = vpop.f32.mrf.mxu0
        %v279 = vadd.f32 %v249, %v278
        %280 = vdwg.mxu0
        %281 = vmatpush.msra.mxu0 0.0
        %282 = vmatpush.msra.mxu0 0.0
        %283 = vmatpush.msra.mxu0 0.0
        %284 = vmatpush.msra.mxu0 0.0
        %285 = vmatpush.msra.mxu0 0.0
        %286 = vmatpush.msra.mxu0 0.0
        %287 = vmatpush.msra.mxu0 0.0
        %288 = vmatpush.msra.mxu0 0.0
        %289 = vmatpush.msra.mxu0 %v238
        %290 = vmatpush.msra.mxu0 %v236
        %291 = vmatpush.msra.mxu0 %v234
        %292 = vmatpush.msra.mxu0 %v232
        %293 = vmatpush.msra.mxu0 %v230
        %294 = vmatpush.msra.mxu0 %v228
        %295 = vmatpush.msra.mxu0 %v226
        %296 = vmatpush.msra.mxu0 %v224
        %297 = vmatmul.f32.gmra.mxu0 %v253
        %v298 = vpop.f32.mrf.mxu0
        %v299 = vadd.f32 %v244, %v298
        %300 = vmatmul.f32.gmra.mxu0 %v256
        %v301 = vpop.f32.mrf.mxu0
        %v302 = vadd.f32 %v249, %v301
        %303 = vdwg.mxu0
        %304 = vst [vmem:[%s219] sm:$0xff] %v276
        %305 = vst [vmem:[%s219 + $0x8] sm:$0xff] %v299
        %306 = vst [vmem:[%s219 + $0x10] sm:$0xf] %v279
        %307 = vst [vmem:[%s219 + $0x18] sm:$0xf] %v302
        %s308 = smul.u32 2, %s22
        %p309 = scmp.lt.s32.totalorder %s21, 1
        %s310 = scalar_select %p309, %s21, 1
        %p311 = scmp.lt.s32.totalorder %s308, 1
        %s312 = scalar_select %p311, %s308, 1
        %s313 = smul.addr %s310, 4
        %s314 = sadd.s32 %s312, %s313
        %s315 = smul.addr %s314, 8
        %s316 = scalar_lea.vmem %s3, %s315
        // Predicated region
        $region37: #{tpu_custom_call.1} parent=31 // pred_check
          %p317 = pneg %p119
        $region38: #{tpu_custom_call.1} parent=31 // pred_check_branch
          %319 = sbr.rel (%p317) target = $region40
        $region39: #{tpu_custom_call.1} parent=31 // pred_region
          %s320 = smul.u32 2, %s22
        $region40: #{tpu_custom_call.1} parent=31 // pred_fallthru
          _
      $region32: #{tpu_custom_call.1} parent=5 // pred_fallthru
        _
      %p321 = scmp.le.s32.totalorder 2, %s12
      // Predicated region
      $region41: #{tpu_custom_call.1} parent=5 // pred_check
        %p322 = pneg %p321
      $region42: #{tpu_custom_call.1} parent=5 // pred_check_branch
        %324 = sbr.rel (%p322) target = $region44
      $region43: #{tpu_custom_call.1} parent=5 // pred_region
        %s325 = ssub.s32 %s12, 2
        // Predicated region
        $region45: #{tpu_custom_call.1} parent=43 // pred_check
          %p326 = pneg %p125
        $region46: #{tpu_custom_call.1} parent=43 // pred_check_branch
          %328 = sbr.rel (%p326) target = $region48
        $region47: #{tpu_custom_call.1} parent=43 // pred_region
          %s329 = smul.u32 2, %s24
          %p330 = scmp.lt.s32.totalorder %s23, 1
          %s331 = scalar_select %p330, %s23, 1
          %p332 = scmp.lt.s32.totalorder %s329, 1
          %s333 = scalar_select %p332, %s329, 1
          %s334 = smul.addr %s331, 4
          %s335 = sadd.s32 %s333, %s334
          %s336 = smul.addr %s335, 8
          %s337 = scalar_lea.vmem %s3, %s336
        $region48: #{tpu_custom_call.1} parent=43 // pred_fallthru
          _
      $region44: #{tpu_custom_call.1} parent=5 // pred_fallthru
        _
    $region6: #{tpu_custom_call.1} parent=1 // loop_footer
      %s16 = sadd.s32 1, %s12
    $region7: #{tpu_custom_call.1} parent=1 // loop_footer_branch
      %11 = sbr.rel target = $region3
    $region8: #{tpu_custom_call.1} parent=1 // loop_exit
      _
    %338 = vsyncpa [#allocation3], 1
    %s339 = scalar_lea.sflag [#allocation3], 1
    %340 = vsyncpa %s339, 1

</llo_original>
